<compile_context>
chip_gen: v6e
topology: v6e:2x2x1
jax: 0.10.0
libtpu: 0.0.40
codegen_flags: <defaults>
</compile_context>

<pallas_src>
import jax
import jax.numpy as jnp
from jax.experimental import pallas as pl
from jax.experimental.pallas import tpu as pltpu

# ---------------- problem sizes (small, consistent with the module) ----------------
N         = 16          # number of nodes
MAX_FREQS = 8           # pecfg.eigen.max_freqs (== f32 sublane tile -> aligned freq reduce)
DIM_PE    = 16          # pecfg.dim_pe
DIM_IN    = 4           # cfg.share.dim_in
DIM_EMB   = 48          # final node embedding size
DIM_X     = DIM_EMB - DIM_PE   # 32, output of linear_x
HID       = 2 * DIM_PE         # 32, DeepSet hidden width (n_layers = 2)

# ---------------- packed-parameter slab layout (sublane-aligned row starts) ----------------
R_WA      = 0                      # rows 0:2   cols 0:HID     -> linear_A weight      [2, 32]
R_W1      = 8                      # rows 8:40  cols 0:DIM_PE  -> pe_encoder weight    [32, 16]
R_WF      = 40                     # rows 40:60 cols 0:DIM_EMB -> blockdiag(wx, wp)    [20, 48]
R_BA      = 64                     # row 64     cols 0:HID     -> linear_A bias
R_B1      = 65                     # row 65     cols 0:DIM_PE  -> pe_encoder bias
R_BF      = 66                     # row 66     cols 0:DIM_EMB -> concat(bx, bp)
SLAB_ROWS = 72                     # padded to a multiple of 8 sublanes
SLAB_COLS = DIM_EMB                # 48 lanes
FUSED_K   = DIM_IN + DIM_PE        # 20, contraction dim of the fused output matmul


# ---------------- Pallas kernel ----------------
def svd_encoder_kernel(pos_ref, x_ref, slab_ref, out_ref):
    tn = out_ref.shape[0]           # nodes in this tile
    tnf = pos_ref.shape[0]          # tn * max_freqs flattened (node, freq) rows
    f = tnf // tn                   # max_freqs (static, == 8)

    # ---- static views into the packed parameter slab (single resident DMA) ----
    wA = slab_ref[R_WA:R_WA + 2, 0:HID]                 # [2, HID]
    bA = slab_ref[R_BA:R_BA + 1, 0:HID]                 # [1, HID]
    w1 = slab_ref[R_W1:R_W1 + HID, 0:DIM_PE]            # [HID, DIM_PE]
    b1 = slab_ref[R_B1:R_B1 + 1, 0:DIM_PE]              # [1, DIM_PE]
    wf = slab_ref[R_WF:R_WF + FUSED_K, 0:DIM_EMB]       # [20, DIM_EMB]  blockdiag(wx, wp)
    bf = slab_ref[R_BF:R_BF + 1, 0:DIM_EMB]             # [1, DIM_EMB]   concat(bx, bp)

    # ---- NaN padding: pos_enc[empty_mask] = 0; keep = ~empty_mask[:, :, 0] ----
    pos = pos_ref[...]                                  # [tnf, 2]
    nan_mask = pos != pos                               # isnan
    pos = jnp.where(nan_mask, 0.0, pos)
    keep = jnp.logical_not(nan_mask[:, 0:1])            # [tnf, 1]

    # ---- linear_A (in=2): VPU broadcast-FMAs, no K=2 MXU padding ----
    h1 = pos[:, 0:1] * wA[0:1, :] + pos[:, 1:2] * wA[1:2, :] + bA   # [tnf, HID]
    h1 = jnp.maximum(h1, 0.0)                           # pe_encoder ReLU

    # ---- pe_encoder Linear(HID -> DIM_PE) + ReLU ----
    h2 = jnp.dot(h1, w1, preferred_element_type=jnp.float32) + b1
    h2 = jnp.maximum(h2, 0.0)                           # [tnf, DIM_PE]

    # ---- masked_fill_(empty_mask[:,:,0], 0) then sum over the freq axis ----
    h2 = jnp.where(keep, h2, 0.0)
    # f == 8 == f32 sublane tile: the split is on tile boundaries, the reduce is an XLU
    # sublane-group sum -> O(tn) instead of the old O(tn^2) summation-matrix matmul.
    pe = jnp.sum(h2.reshape(tn, f, DIM_PE), axis=1)     # [tn, DIM_PE]

    # ---- fused linear_x + post_mlp: one block-diagonal matmul -> [tn, DIM_EMB] ----
    lhs = jnp.concatenate([x_ref[...], pe], axis=1)     # [tn, DIM_IN + DIM_PE]
    y = jnp.dot(lhs, wf, preferred_element_type=jnp.float32) + bf   # [tn, DIM_EMB]
    # ReLU only on the post_mlp lanes (last DIM_PE); linear_x output has no activation.
    col = jax.lax.broadcasted_iota(jnp.int32, y.shape, 1)
    y = jnp.where(col >= DIM_X, jnp.maximum(y, 0.0), y)

    # ---- single lane-contiguous store of cat((h, pos_enc), dim=1) ----
    out_ref[...] = y.astype(out_ref.dtype)


# ---------------- parameter packing (wrapper-side, cheap XLA ops) ----------------
def pack_params(params):
    wA, bA, w1, b1, wp, bp, wx, bx = params
    slab = jnp.zeros((SLAB_ROWS, SLAB_COLS), jnp.float32)
    slab = slab.at[R_WA:R_WA + 2, 0:HID].set(wA)
    slab = slab.at[R_W1:R_W1 + HID, 0:DIM_PE].set(w1)
    # block-diagonal fused weight: [x | pe] @ blockdiag(wx, wp) == [x@wx | pe@wp]
    slab = slab.at[R_WF:R_WF + DIM_IN, 0:DIM_X].set(wx)
    slab = slab.at[R_WF + DIM_IN:R_WF + FUSED_K, DIM_X:DIM_EMB].set(wp)
    slab = slab.at[R_BA, 0:HID].set(bA[0])
    slab = slab.at[R_B1, 0:DIM_PE].set(b1[0])
    slab = slab.at[R_BF, 0:DIM_X].set(bx[0])
    slab = slab.at[R_BF, DIM_X:DIM_EMB].set(bp[0])
    return slab


# ---------------- wrapper ----------------
def svd_node_encoder(pos_enc, x, params, *, tile_nodes=None):
    """pos_enc: [N, MAX_FREQS, 2] (may contain NaN padding), x: [N, DIM_IN].

    Returns (x_out [N, DIM_EMB], pe_LapPE [N, DIM_PE])."""
    n, f, c = pos_enc.shape
    assert c == 2
    if tile_nodes is None:
        tile_nodes = n                  # collapse the grid for small graphs
    assert n % tile_nodes == 0
    num_tiles = n // tile_nodes
    # (8,128) rule: partial blocks need sublane dims that are multiples of 8
    assert tile_nodes == n or (tile_nodes % 8 == 0 and (tile_nodes * f) % 8 == 0), \
        "tile_nodes must be a multiple of 8 when tiling"

    # layout plumbing stays in the wrapper; kernel input views are reshape-free
    pos_flat = pos_enc.reshape(n * f, 2)
    slab = pack_params(params)

    in_specs = [
        pl.BlockSpec((tile_nodes * f, 2), lambda i: (i, 0)),
        pl.BlockSpec((tile_nodes, DIM_IN), lambda i: (i, 0)),
        pl.BlockSpec((SLAB_ROWS, SLAB_COLS), lambda i: (0, 0)),   # resident across all steps
    ]
    out_specs = pl.BlockSpec((tile_nodes, DIM_EMB), lambda i: (i, 0))

    # advisory scheduler hints for this microsecond-scale kernel
    flops = (4 * n * f * HID                      # linear_A FMAs (VPU)
             + 2 * n * f * HID * DIM_PE           # pe_encoder linear
             + 2 * n * FUSED_K * DIM_EMB)         # fused linear_x + post_mlp
    # resident slab (constant index_map) is fetched once, not per tile
    bytes_accessed = 4 * (pos_flat.size + x.size + slab.size + n * DIM_EMB)

    out = pl.pallas_call(
        svd_encoder_kernel,
        out_shape=jax.ShapeDtypeStruct((n, DIM_EMB), jnp.float32),
        grid_spec=pl.GridSpec(grid=(num_tiles,), in_specs=in_specs, out_specs=out_specs),
        compiler_params=pltpu.CompilerParams(
            dimension_semantics=(("parallel",) if num_tiles > 1 else ("arbitrary",))),
        cost_estimate=pl.CostEstimate(flops=flops, transcendentals=0,
                                      bytes_accessed=bytes_accessed),
    )(pos_flat, x, slab)

    x_out = out                         # batch.x = cat(linear_x(x), pos_enc)
    pe_out = out[:, DIM_X:]             # batch.pe_LapPE == last DIM_PE columns of x_out
    return x_out, pe_out


# ---------------- pure-JAX reference (sanity check) ----------------
def reference(pos_enc, x, params):
    wA, bA, w1, b1, wp, bp, wx, bx = params
    nan_mask = jnp.isnan(pos_enc)
    p = jnp.where(nan_mask, 0.0, pos_enc)
    keep = ~nan_mask[:, :, 0]
    h1 = jnp.maximum(p @ wA + bA, 0.0)
    h2 = jnp.maximum(h1 @ w1 + b1, 0.0)
    h2 = jnp.where(keep[:, :, None], h2, 0.0)
    pe = jnp.sum(h2, axis=1)
    pe = jnp.maximum(pe @ wp + bp, 0.0)
    hx = x @ wx + bx
    return jnp.concatenate([hx, pe], axis=1), pe


def _make_inputs(key, n):
    k1, k2 = jax.random.split(key)
    pos_enc = jax.random.normal(k1, (n, MAX_FREQS, 2), jnp.float32)
    freq_idx = jnp.arange(MAX_FREQS)[None, :, None]                        # [1, F, 1]
    valid_freqs = (3 + (jnp.arange(n) % (MAX_FREQS - 2)))[:, None, None]   # per-node valid count
    pos_enc = jnp.where(freq_idx < valid_freqs, pos_enc, jnp.nan)          # NaN-pad like real SVD PEs
    x = jax.random.normal(k2, (n, DIM_IN), jnp.float32)
    return pos_enc, x


if __name__ == "__main__":
    key = jax.random.PRNGKey(0)
    ks = jax.random.split(key, 10)

    # deterministic synthetic parameters (shapes from __init__)
    wA = 0.1 * jax.random.normal(ks[0], (2, HID), jnp.float32)
    bA = 0.1 * jax.random.normal(ks[1], (1, HID), jnp.float32)
    w1 = 0.1 * jax.random.normal(ks[2], (HID, DIM_PE), jnp.float32)
    b1 = 0.1 * jax.random.normal(ks[3], (1, DIM_PE), jnp.float32)
    wp = 0.1 * jax.random.normal(ks[4], (DIM_PE, DIM_PE), jnp.float32)
    bp = 0.1 * jax.random.normal(ks[5], (1, DIM_PE), jnp.float32)
    wx = 0.1 * jax.random.normal(ks[6], (DIM_IN, DIM_X), jnp.float32)
    bx = 0.1 * jax.random.normal(ks[7], (1, DIM_X), jnp.float32)
    params = (wA, bA, w1, b1, wp, bp, wx, bx)

    # ---- case 1: tiny graph, single-step grid (N = 16) ----
    pos_enc, x = _make_inputs(ks[8], N)
    x_out, pe_out = svd_node_encoder(pos_enc, x, params)
    jax.block_until_ready((x_out, pe_out))
    x_ref, pe_ref = reference(pos_enc, x, params)
    assert x_out.dtype == jnp.float32 and pe_out.dtype == jnp.float32
    assert jnp.allclose(x_out, x_ref, atol=1e-5, rtol=1e-5)
    assert jnp.allclose(pe_out, pe_ref, atol=1e-5, rtol=1e-5)

    # ---- case 2: batched nodes, multi-tile "parallel" grid (exercises v7x megacore path) ----
    n2, tile2 = 64, 16
    pos_enc2, x2 = _make_inputs(ks[9], n2)
    x_out2, pe_out2 = svd_node_encoder(pos_enc2, x2, params, tile_nodes=tile2)
    jax.block_until_ready((x_out2, pe_out2))
    x_ref2, pe_ref2 = reference(pos_enc2, x2, params)
    assert jnp.allclose(x_out2, x_ref2, atol=1e-5, rtol=1e-5)
    assert jnp.allclose(pe_out2, pe_ref2, atol=1e-5, rtol=1e-5)

    print("KERNEL_OK")
</pallas_src>

<mosaic_0001>
module attributes {stable_mosaic.version = 11 : i64} {
  func.func @svd_encoder_kernel(%arg0: i32, %arg1: memref<128x2xf32, #tpu.memory_space<vmem>>, %arg2: memref<16x4xf32, #tpu.memory_space<vmem>>, %arg3: memref<72x48xf32, #tpu.memory_space<vmem>>, %arg4: memref<16x48xf32, #tpu.memory_space<vmem>>) attributes {dimension_semantics = [#tpu.dimension_semantics<arbitrary>], iteration_bounds = array<i64: 1>, scalar_prefetch = 0 : i64, scratch_operands = 0 : i64, tpu.core_type = #tpu.core_type<tc>, window_params = [{transform_indices = @transform_0, window_bounds = array<i64: 128, 2>}, {transform_indices = @transform_1, window_bounds = array<i64: 16, 4>}, {pipeline_mode = #tpu.pipeline_mode<synchronous>, transform_indices = @transform_2, window_bounds = array<i64: 72, 48>}, {transform_indices = @transform_3, window_bounds = array<i64: 16, 48>}]} {
    %c0 = arith.constant 0 : index
    %c0_0 = arith.constant 0 : index
    %0 = vector.load %arg3[%c0, %c0_0] : memref<72x48xf32, #tpu.memory_space<vmem>>, vector<2x32xf32>
    %c64 = arith.constant 64 : index
    %c0_1 = arith.constant 0 : index
    %1 = vector.load %arg3[%c64, %c0_1] : memref<72x48xf32, #tpu.memory_space<vmem>>, vector<1x32xf32>
    %c8 = arith.constant 8 : index
    %c0_2 = arith.constant 0 : index
    %2 = vector.load %arg3[%c8, %c0_2] : memref<72x48xf32, #tpu.memory_space<vmem>>, vector<32x16xf32>
    %c65 = arith.constant 65 : index
    %c0_3 = arith.constant 0 : index
    %3 = vector.load %arg3[%c65, %c0_3] : memref<72x48xf32, #tpu.memory_space<vmem>>, vector<1x16xf32>
    %c40 = arith.constant 40 : index
    %c0_4 = arith.constant 0 : index
    %4 = vector.load %arg3[%c40, %c0_4] : memref<72x48xf32, #tpu.memory_space<vmem>>, vector<20x48xf32>
    %c66 = arith.constant 66 : index
    %c0_5 = arith.constant 0 : index
    %5 = vector.load %arg3[%c66, %c0_5] : memref<72x48xf32, #tpu.memory_space<vmem>>, vector<1x48xf32>
    %c0_6 = arith.constant 0 : index
    %c0_7 = arith.constant 0 : index
    %6 = vector.load %arg1[%c0_6, %c0_7] : memref<128x2xf32, #tpu.memory_space<vmem>>, vector<128x2xf32>
    %7 = arith.cmpf one, %6, %6 : vector<128x2xf32>
    %cst = arith.constant 0.000000e+00 : f32
    %8 = vector.broadcast %cst : f32 to vector<128x2xf32>
    %9 = arith.select %7, %8, %6 : vector<128x2xi1>, vector<128x2xf32>
    %10 = vector.extract_strided_slice %7 {offsets = [0, 0], sizes = [128, 1], strides = [1, 1]} : vector<128x2xi1> to vector<128x1xi1>
    %cst_8 = arith.constant dense<true> : vector<128x1xi1>
    %11 = arith.xori %10, %cst_8 : vector<128x1xi1>
    %12 = vector.extract_strided_slice %9 {offsets = [0, 0], sizes = [128, 1], strides = [1, 1]} : vector<128x2xf32> to vector<128x1xf32>
    %13 = vector.extract_strided_slice %0 {offsets = [0, 0], sizes = [1, 32], strides = [1, 1]} : vector<2x32xf32> to vector<1x32xf32>
    %14 = vector.broadcast %12 : vector<128x1xf32> to vector<128x32xf32>
    %15 = vector.broadcast %13 : vector<1x32xf32> to vector<128x32xf32>
    %16 = arith.mulf %14, %15 : vector<128x32xf32>
    %17 = vector.extract_strided_slice %9 {offsets = [0, 1], sizes = [128, 1], strides = [1, 1]} : vector<128x2xf32> to vector<128x1xf32>
    %18 = vector.extract_strided_slice %0 {offsets = [1, 0], sizes = [1, 32], strides = [1, 1]} : vector<2x32xf32> to vector<1x32xf32>
    %19 = vector.broadcast %17 : vector<128x1xf32> to vector<128x32xf32>
    %20 = vector.broadcast %18 : vector<1x32xf32> to vector<128x32xf32>
    %21 = arith.mulf %19, %20 : vector<128x32xf32>
    %22 = arith.addf %16, %21 : vector<128x32xf32>
    %23 = vector.broadcast %1 : vector<1x32xf32> to vector<128x32xf32>
    %24 = arith.addf %22, %23 : vector<128x32xf32>
    %cst_9 = arith.constant 0.000000e+00 : f32
    %25 = vector.broadcast %cst_9 : f32 to vector<128x32xf32>
    %26 = arith.maximumf %24, %25 : vector<128x32xf32>
    %cst_10 = arith.constant dense<0.000000e+00> : vector<128x16xf32>
    %27 = tpu.matmul %26, %2, %cst_10 {dimension_numbers = #tpu.dot_dimension_numbers<[1], [0], [0], [1], [0, 0, 1, 1], [], []>} : vector<128x32xf32>, vector<32x16xf32>, vector<128x16xf32> -> vector<128x16xf32>
    %28 = vector.broadcast %3 : vector<1x16xf32> to vector<128x16xf32>
    %29 = arith.addf %27, %28 : vector<128x16xf32>
    %cst_11 = arith.constant 0.000000e+00 : f32
    %30 = vector.broadcast %cst_11 : f32 to vector<128x16xf32>
    %31 = arith.maximumf %29, %30 : vector<128x16xf32>
    %cst_12 = arith.constant 0.000000e+00 : f32
    %32 = vector.shape_cast %11 : vector<128x1xi1> to vector<128x1xi1>
    %33 = vector.broadcast %32 : vector<128x1xi1> to vector<128x16xi1>
    %34 = vector.broadcast %cst_12 : f32 to vector<128x16xf32>
    %35 = arith.select %33, %31, %34 : vector<128x16xi1>, vector<128x16xf32>
    %36 = vector.shape_cast %35 : vector<128x16xf32> to vector<16x8x16xf32>
    %cst_13 = arith.constant dense<0.000000e+00> : vector<16x16xf32>
    %37 = vector.multi_reduction <add>, %36, %cst_13 [1] : vector<16x8x16xf32> to vector<16x16xf32>
    %c0_14 = arith.constant 0 : index
    %c0_15 = arith.constant 0 : index
    %38 = vector.load %arg2[%c0_14, %c0_15] : memref<16x4xf32, #tpu.memory_space<vmem>>, vector<16x4xf32>
    %39 = tpu.concatenate %38, %37 in 1 : vector<16x4xf32>, vector<16x16xf32> -> vector<16x20xf32>
    %cst_16 = arith.constant dense<0.000000e+00> : vector<16x48xf32>
    %40 = tpu.matmul %39, %4, %cst_16 {dimension_numbers = #tpu.dot_dimension_numbers<[1], [0], [0], [1], [0, 0, 1, 1], [], []>} : vector<16x20xf32>, vector<20x48xf32>, vector<16x48xf32> -> vector<16x48xf32>
    %41 = vector.broadcast %5 : vector<1x48xf32> to vector<16x48xf32>
    %42 = arith.addf %40, %41 : vector<16x48xf32>
    %43 = tpu.iota {dimensions = array<i32: 1>} : vector<16x48xi32>
    %c32_i32 = arith.constant 32 : i32
    %44 = vector.broadcast %c32_i32 : i32 to vector<16x48xi32>
    %45 = arith.cmpi sge, %43, %44 : vector<16x48xi32>
    %cst_17 = arith.constant 0.000000e+00 : f32
    %46 = vector.broadcast %cst_17 : f32 to vector<16x48xf32>
    %47 = arith.maximumf %42, %46 : vector<16x48xf32>
    %48 = arith.select %45, %47, %42 : vector<16x48xi1>, vector<16x48xf32>
    %c0_18 = arith.constant 0 : index
    %c0_19 = arith.constant 0 : index
    %49 = vector.load %arg4[%c0_18, %c0_19] : memref<16x48xf32, #tpu.memory_space<vmem>>, vector<16x48xf32>
    tpu.vector_store %arg4[%c0_18, %c0_19], %48 {strides = array<i32>} : memref<16x48xf32, #tpu.memory_space<vmem>>, vector<16x48xf32>,
    return
  }
  func.func @transform_0(%arg0: i32) -> (i32, i32) {
    %c0_i32 = arith.constant 0 : i32
    %c0_i32_0 = arith.constant 0 : i32
    return %arg0, %c0_i32 : i32, i32
  }
  func.func @transform_1(%arg0: i32) -> (i32, i32) {
    %c0_i32 = arith.constant 0 : i32
    %c0_i32_0 = arith.constant 0 : i32
    return %arg0, %c0_i32 : i32, i32
  }
  func.func @transform_2(%arg0: i32) -> (i32, i32) {
    %c0_i32 = arith.constant 0 : i32
    %c0_i32_0 = arith.constant 0 : i32
    %c0_i32_1 = arith.constant 0 : i32
    return %c0_i32, %c0_i32_0 : i32, i32
  }
  func.func @transform_3(%arg0: i32) -> (i32, i32) {
    %c0_i32 = arith.constant 0 : i32
    %c0_i32_0 = arith.constant 0 : i32
    return %arg0, %c0_i32 : i32, i32
  }
}

</mosaic_0001>

<llo_original>
// kernel: tpu_custom_call.1
$region0: #{tpu_custom_call.1}
  #allocation0 [shape = 'u32[]', space=smem, size = 0x4, offset = 0x4, fixed_abs, tag = 'smem constant byte address 0x4 - core index']
  #allocation1 [shape = 'u32[144,128]{1,0:T(1,128)}', space=vmem, size = 0x12000, scoped, tag = 'internal scratch']
  %s0 = inlined_call_operand.vmem [shape: f32[128,2], index: 0, kind: input, shape index: {}]
  %s1 = inlined_call_operand.vmem [shape: f32[16,4], index: 1, kind: input, shape index: {}]
  %s2 = inlined_call_operand.vmem [shape: f32[72,48], index: 2, kind: input, shape index: {}]
  %s3 = inlined_call_operand.hbm [shape: f32[16,48], index: 3, kind: output, shape index: {}]
  %s4 = sld [smem:[#allocation0]]
  $region22: #{tpu_custom_call.1} parent=0
    _
  %s6 = ssub.s32 1, %s4
  %s7 = scalar_select 0, %s6, %s4
  $region1: #{tpu_custom_call.1} parent=0
    #allocation2 [shape = 'u8[8192]{0}', space=vmem, size = 0x2000, scoped, tag = 'output window, operand 0, single buffered']
    #allocation3 [shape = 's32[1]{0}', space=sflag, size = 0x4, scoped, tag = 'scoped memory for tpu_custom_call.1']
    %8 = vsyncpa [#allocation3], 0
    // Predicated region
    $region2: #{tpu_custom_call.1} parent=1 // pred_check
      _
    $region3: #{tpu_custom_call.1} parent=1 // pred_check_branch
      %10 = sbr.rel (0) target = $region5
    $region4: #{tpu_custom_call.1} parent=1 // pred_region
      _
    $region5: #{tpu_custom_call.1} parent=1 // pred_fallthru
      _
    // Predicated region
    $region6: #{tpu_custom_call.1} parent=1 // pred_check
      _
    $region7: #{tpu_custom_call.1} parent=1 // pred_check_branch
      %12 = sbr.rel (0) target = $region9
    $region8: #{tpu_custom_call.1} parent=1 // pred_region
      _
    $region9: #{tpu_custom_call.1} parent=1 // pred_fallthru
      _
    // Predicated region
    $region10: #{tpu_custom_call.1} parent=1 // pred_check
      _
    $region11: #{tpu_custom_call.1} parent=1 // pred_check_branch
      %14 = sbr.rel (0) target = $region13
    $region12: #{tpu_custom_call.1} parent=1 // pred_region
      _
    $region13: #{tpu_custom_call.1} parent=1 // pred_fallthru
      _
    %v15 = vld [vmem:[%s2] sm:$0x3]
    %v16 = vld [vmem:[%s2 + $0x40] sm:$0x1]
    %v17 = vld [vmem:[%s2 + $0x8] sm:$0xff]
    %v18 = vld [vmem:[%s2 + $0x10] sm:$0xff]
    %v19 = vld [vmem:[%s2 + $0x18] sm:$0xff]
    %v20 = vld [vmem:[%s2 + $0x20] sm:$0xff]
    %v21 = vld [vmem:[%s2 + $0x41] sm:$0x1]
    %v22 = vld [vmem:[%s2 + $0x28] sm:$0xff]
    %v23 = vld [vmem:[%s2 + $0x30] sm:$0xff]
    %v24 = vld [vmem:[%s2 + $0x38] sm:$0xf]
    %v25 = vld [vmem:[%s2 + $0x42] sm:$0x1]
    %v26 = vld [vmem:[%s0] sm:$0xff]
    %v27 = vld [vmem:[%s0 + $0x8] sm:$0xff]
    %v28 = vld [vmem:[%s0 + $0x10] sm:$0xff]
    %v29 = vld [vmem:[%s0 + $0x18] sm:$0xff]
    %v30 = vld [vmem:[%s0 + $0x20] sm:$0xff]
    %v31 = vld [vmem:[%s0 + $0x28] sm:$0xff]
    %v32 = vld [vmem:[%s0 + $0x30] sm:$0xff]
    %v33 = vld [vmem:[%s0 + $0x38] sm:$0xff]
    %v34 = vld [vmem:[%s0 + $0x40] sm:$0xff]
    %v35 = vld [vmem:[%s0 + $0x48] sm:$0xff]
    %v36 = vld [vmem:[%s0 + $0x50] sm:$0xff]
    %v37 = vld [vmem:[%s0 + $0x58] sm:$0xff]
    %v38 = vld [vmem:[%s0 + $0x60] sm:$0xff]
    %v39 = vld [vmem:[%s0 + $0x68] sm:$0xff]
    %v40 = vld [vmem:[%s0 + $0x70] sm:$0xff]
    %v41 = vld [vmem:[%s0 + $0x78] sm:$0xff]
    %vm42 = vcmp.ne.f32.partialorder %v26, %v26
    %vm43 = vcmp.ne.f32.partialorder %v27, %v27
    %vm44 = vcmp.ne.f32.partialorder %v28, %v28
    %vm45 = vcmp.ne.f32.partialorder %v29, %v29
    %vm46 = vcmp.ne.f32.partialorder %v30, %v30
    %vm47 = vcmp.ne.f32.partialorder %v31, %v31
    %vm48 = vcmp.ne.f32.partialorder %v32, %v32
    %vm49 = vcmp.ne.f32.partialorder %v33, %v33
    %vm50 = vcmp.ne.f32.partialorder %v34, %v34
    %vm51 = vcmp.ne.f32.partialorder %v35, %v35
    %vm52 = vcmp.ne.f32.partialorder %v36, %v36
    %vm53 = vcmp.ne.f32.partialorder %v37, %v37
    %vm54 = vcmp.ne.f32.partialorder %v38, %v38
    %vm55 = vcmp.ne.f32.partialorder %v39, %v39
    %vm56 = vcmp.ne.f32.partialorder %v40, %v40
    %vm57 = vcmp.ne.f32.partialorder %v41, %v41
    %v58 = vsel %vm42, 0.0, %v26
    %v59 = vsel %vm43, 0.0, %v27
    %v60 = vsel %vm44, 0.0, %v28
    %v61 = vsel %vm45, 0.0, %v29
    %v62 = vsel %vm46, 0.0, %v30
    %v63 = vsel %vm47, 0.0, %v31
    %v64 = vsel %vm48, 0.0, %v32
    %v65 = vsel %vm49, 0.0, %v33
    %v66 = vsel %vm50, 0.0, %v34
    %v67 = vsel %vm51, 0.0, %v35
    %v68 = vsel %vm52, 0.0, %v36
    %v69 = vsel %vm53, 0.0, %v37
    %v70 = vsel %vm54, 0.0, %v38
    %v71 = vsel %vm55, 0.0, %v39
    %v72 = vsel %vm56, 0.0, %v40
    %v73 = vsel %vm57, 0.0, %v41
    %vm74 = vmxor %vm42, 1
    %vm75 = vmxor %vm43, 1
    %vm76 = vmxor %vm44, 1
    %vm77 = vmxor %vm45, 1
    %vm78 = vmxor %vm46, 1
    %vm79 = vmxor %vm47, 1
    %vm80 = vmxor %vm48, 1
    %vm81 = vmxor %vm49, 1
    %vm82 = vmxor %vm50, 1
    %vm83 = vmxor %vm51, 1
    %vm84 = vmxor %vm52, 1
    %vm85 = vmxor %vm53, 1
    %vm86 = vmxor %vm54, 1
    %vm87 = vmxor %vm55, 1
    %vm88 = vmxor %vm56, 1
    %vm89 = vmxor %vm57, 1
    %91 = vset.pattern.permute.xlu0 0
    %92 = vperm.xlu0 %91, %v58
    %v93 = vpop.permute.xlu0 %92
    %96 = vset.pattern.permute.xlu0 0
    %97 = vperm.xlu0 %96, %v59
    %v98 = vpop.permute.xlu0 %97
    %101 = vset.pattern.permute.xlu0 0
    %102 = vperm.xlu0 %101, %v60
    %v103 = vpop.permute.xlu0 %102
    %106 = vset.pattern.permute.xlu0 0
    %107 = vperm.xlu0 %106, %v61
    %v108 = vpop.permute.xlu0 %107
    %111 = vset.pattern.permute.xlu0 0
    %112 = vperm.xlu0 %111, %v62
    %v113 = vpop.permute.xlu0 %112
    %116 = vset.pattern.permute.xlu0 0
    %117 = vperm.xlu0 %116, %v63
    %v118 = vpop.permute.xlu0 %117
    %121 = vset.pattern.permute.xlu0 0
    %122 = vperm.xlu0 %121, %v64
    %v123 = vpop.permute.xlu0 %122
    %126 = vset.pattern.permute.xlu0 0
    %127 = vperm.xlu0 %126, %v65
    %v128 = vpop.permute.xlu0 %127
    %131 = vset.pattern.permute.xlu0 0
    %132 = vperm.xlu0 %131, %v66
    %v133 = vpop.permute.xlu0 %132
    %136 = vset.pattern.permute.xlu0 0
    %137 = vperm.xlu0 %136, %v67
    %v138 = vpop.permute.xlu0 %137
    %141 = vset.pattern.permute.xlu0 0
    %142 = vperm.xlu0 %141, %v68
    %v143 = vpop.permute.xlu0 %142
    %146 = vset.pattern.permute.xlu0 0
    %147 = vperm.xlu0 %146, %v69
    %v148 = vpop.permute.xlu0 %147
    %151 = vset.pattern.permute.xlu0 0
    %152 = vperm.xlu0 %151, %v70
    %v153 = vpop.permute.xlu0 %152
    %156 = vset.pattern.permute.xlu0 0
    %157 = vperm.xlu0 %156, %v71
    %v158 = vpop.permute.xlu0 %157
    %161 = vset.pattern.permute.xlu0 0
    %162 = vperm.xlu0 %161, %v72
    %v163 = vpop.permute.xlu0 %162
    %166 = vset.pattern.permute.xlu0 0
    %167 = vperm.xlu0 %166, %v73
    %v168 = vpop.permute.xlu0 %167
    %v170 = vlaneseq
    %v171 = vshrl.u32 %v170, 7
    %v172 = vsub.s32 0, %v171
    %v173 = vrot.slane %v15, %v172
    %v174 = vmul.f32 %v93, %v173
    %v175 = vmul.f32 %v98, %v173
    %v176 = vmul.f32 %v103, %v173
    %v177 = vmul.f32 %v108, %v173
    %v178 = vmul.f32 %v113, %v173
    %v179 = vmul.f32 %v118, %v173
    %v180 = vmul.f32 %v123, %v173
    %v181 = vmul.f32 %v128, %v173
    %v182 = vmul.f32 %v133, %v173
    %v183 = vmul.f32 %v138, %v173
    %v184 = vmul.f32 %v143, %v173
    %v185 = vmul.f32 %v148, %v173
    %v186 = vmul.f32 %v153, %v173
    %v187 = vmul.f32 %v158, %v173
    %v188 = vmul.f32 %v163, %v173
    %v189 = vmul.f32 %v168, %v173
    %190 = vset.pattern.permute.xlu0 1
    %191 = vperm.xlu0 %190, %v58
    %v192 = vpop.permute.xlu0 %191
    %194 = vset.pattern.permute.xlu0 1
    %195 = vperm.xlu0 %194, %v59
    %v196 = vpop.permute.xlu0 %195
    %198 = vset.pattern.permute.xlu0 1
    %199 = vperm.xlu0 %198, %v60
    %v200 = vpop.permute.xlu0 %199
    %202 = vset.pattern.permute.xlu0 1
    %203 = vperm.xlu0 %202, %v61
    %v204 = vpop.permute.xlu0 %203
    %206 = vset.pattern.permute.xlu0 1
    %207 = vperm.xlu0 %206, %v62
    %v208 = vpop.permute.xlu0 %207
    %210 = vset.pattern.permute.xlu0 1
    %211 = vperm.xlu0 %210, %v63
    %v212 = vpop.permute.xlu0 %211
    %214 = vset.pattern.permute.xlu0 1
    %215 = vperm.xlu0 %214, %v64
    %v216 = vpop.permute.xlu0 %215
    %218 = vset.pattern.permute.xlu0 1
    %219 = vperm.xlu0 %218, %v65
    %v220 = vpop.permute.xlu0 %219
    %222 = vset.pattern.permute.xlu0 1
    %223 = vperm.xlu0 %222, %v66
    %v224 = vpop.permute.xlu0 %223
    %226 = vset.pattern.permute.xlu0 1
    %227 = vperm.xlu0 %226, %v67
    %v228 = vpop.permute.xlu0 %227
    %230 = vset.pattern.permute.xlu0 1
    %231 = vperm.xlu0 %230, %v68
    %v232 = vpop.permute.xlu0 %231
    %234 = vset.pattern.permute.xlu0 1
    %235 = vperm.xlu0 %234, %v69
    %v236 = vpop.permute.xlu0 %235
    %238 = vset.pattern.permute.xlu0 1
    %239 = vperm.xlu0 %238, %v70
    %v240 = vpop.permute.xlu0 %239
    %242 = vset.pattern.permute.xlu0 1
    %243 = vperm.xlu0 %242, %v71
    %v244 = vpop.permute.xlu0 %243
    %246 = vset.pattern.permute.xlu0 1
    %247 = vperm.xlu0 %246, %v72
    %v248 = vpop.permute.xlu0 %247
    %250 = vset.pattern.permute.xlu0 1
    %251 = vperm.xlu0 %250, %v73
    %v252 = vpop.permute.xlu0 %251
    %v254 = vlaneseq
    %v255 = vshrl.u32 %v254, 7
    %v256 = vsub.s32 1, %v255
    %v257 = vrot.slane %v15, %v256
    %v258 = vmul.f32 %v192, %v257
    %v259 = vmul.f32 %v196, %v257
    %v260 = vmul.f32 %v200, %v257
    %v261 = vmul.f32 %v204, %v257
    %v262 = vmul.f32 %v208, %v257
    %v263 = vmul.f32 %v212, %v257
    %v264 = vmul.f32 %v216, %v257
    %v265 = vmul.f32 %v220, %v257
    %v266 = vmul.f32 %v224, %v257
    %v267 = vmul.f32 %v228, %v257
    %v268 = vmul.f32 %v232, %v257
    %v269 = vmul.f32 %v236, %v257
    %v270 = vmul.f32 %v240, %v257
    %v271 = vmul.f32 %v244, %v257
    %v272 = vmul.f32 %v248, %v257
    %v273 = vmul.f32 %v252, %v257
    %v274 = vadd.f32 %v174, %v258
    %v275 = vadd.f32 %v175, %v259
    %v276 = vadd.f32 %v176, %v260
    %v277 = vadd.f32 %v177, %v261
    %v278 = vadd.f32 %v178, %v262
    %v279 = vadd.f32 %v179, %v263
    %v280 = vadd.f32 %v180, %v264
    %v281 = vadd.f32 %v181, %v265
    %v282 = vadd.f32 %v182, %v266
    %v283 = vadd.f32 %v183, %v267
    %v284 = vadd.f32 %v184, %v268
    %v285 = vadd.f32 %v185, %v269
    %v286 = vadd.f32 %v186, %v270
    %v287 = vadd.f32 %v187, %v271
    %v288 = vadd.f32 %v188, %v272
    %v289 = vadd.f32 %v189, %v273
    %v290 = vlaneseq
    %v291 = vshrl.u32 %v290, 7
    %v292 = vsub.s32 0, %v291
    %v293 = vrot.slane %v16, %v292
    %v294 = vadd.f32 %v274, %v293
    %v295 = vadd.f32 %v275, %v293
    %v296 = vadd.f32 %v276, %v293
    %v297 = vadd.f32 %v277, %v293
    %v298 = vadd.f32 %v278, %v293
    %v299 = vadd.f32 %v279, %v293
    %v300 = vadd.f32 %v280, %v293
    %v301 = vadd.f32 %v281, %v293
    %v302 = vadd.f32 %v282, %v293
    %v303 = vadd.f32 %v283, %v293
    %v304 = vadd.f32 %v284, %v293
    %v305 = vadd.f32 %v285, %v293
    %v306 = vadd.f32 %v286, %v293
    %v307 = vadd.f32 %v287, %v293
    %v308 = vadd.f32 %v288, %v293
    %v309 = vadd.f32 %v289, %v293
    %v310 = vmax.f32 %v294, 0.0
    %v311 = vmax.f32 %v295, 0.0
    %v312 = vmax.f32 %v296, 0.0
    %v313 = vmax.f32 %v297, 0.0
    %v314 = vmax.f32 %v298, 0.0
    %v315 = vmax.f32 %v299, 0.0
    %v316 = vmax.f32 %v300, 0.0
    %v317 = vmax.f32 %v301, 0.0
    %v318 = vmax.f32 %v302, 0.0
    %v319 = vmax.f32 %v303, 0.0
    %v320 = vmax.f32 %v304, 0.0
    %v321 = vmax.f32 %v305, 0.0
    %v322 = vmax.f32 %v306, 0.0
    %v323 = vmax.f32 %v307, 0.0
    %v324 = vmax.f32 %v308, 0.0
    %v325 = vmax.f32 %v309, 0.0
    %v326 = vlaneseq
    %v327 = vshrl.u32 %v326, 7
    %v328 = vsub.s32 0, %v327
    %v329 = vrot.slane %v21, %v328
    %vm330 = vcmask 261120
    %v332 = vsel %vm330, %v310, 0
    %v335 = vsel %vm330, %v311, 0
    %v338 = vsel %vm330, %v312, 0
    %v341 = vsel %vm330, %v313, 0
    %v344 = vsel %vm330, %v314, 0
    %v347 = vsel %vm330, %v315, 0
    %v350 = vsel %vm330, %v316, 0
    %v353 = vsel %vm330, %v317, 0
    %v356 = vsel %vm330, %v318, 0
    %v359 = vsel %vm330, %v319, 0
    %v362 = vsel %vm330, %v320, 0
    %v365 = vsel %vm330, %v321, 0
    %v368 = vsel %vm330, %v322, 0
    %v371 = vsel %vm330, %v323, 0
    %v374 = vsel %vm330, %v324, 0
    %v377 = vsel %vm330, %v325, 0
    %379 = vmatprep.subr.mxu0 0.0
    %380 = vmatpush1.msra.mxu0 0.0
    %381 = vmatprep.subr.mxu0 0.0
    %382 = vmatpush1.msra.mxu0 0.0
    %383 = vmatprep.subr.mxu0 0.0
    %384 = vmatpush1.msra.mxu0 0.0
    %385 = vmatprep.subr.mxu0 0.0
    %386 = vmatpush1.msra.mxu0 0.0
    %387 = vmatprep.subr.mxu0 0.0
    %388 = vmatpush1.msra.mxu0 0.0
    %389 = vmatprep.subr.mxu0 0.0
    %390 = vmatpush1.msra.mxu0 0.0
    %391 = vmatprep.subr.mxu0 0.0
    %392 = vmatpush1.msra.mxu0 0.0
    %393 = vmatprep.subr.mxu0 0.0
    %394 = vmatpush1.msra.mxu0 0.0
    %395 = vmatprep.subr.mxu0 0.0
    %396 = vmatpush1.msra.mxu0 0.0
    %397 = vmatprep.subr.mxu0 0.0
    %398 = vmatpush1.msra.mxu0 0.0
    %399 = vmatprep.subr.mxu0 0.0
    %400 = vmatpush1.msra.mxu0 0.0
    %401 = vmatprep.subr.mxu0 0.0
    %402 = vmatpush1.msra.mxu0 0.0
    %403 = vmatprep.subr.mxu0 0.0
    %404 = vmatpush1.msra.mxu0 %v20
    %405 = vmatprep.subr.mxu0 0.0
    %406 = vmatpush1.msra.mxu0 %v19
    %407 = vmatprep.subr.mxu0 0.0
    %408 = vmatpush1.msra.mxu0 %v18
    %409 = vmatprep.subr.mxu0 0.0
    %410 = vmatpush1.msra.mxu0 %v17
    %411 = vmatprep.subr.mxu0 0.0
    %412 = vmatpush2.msra.mxu0 0.0
    %413 = vmatprep.subr.mxu0 0.0
    %414 = vmatpush2.msra.mxu0 0.0
    %415 = vmatprep.subr.mxu0 0.0
    %416 = vmatpush2.msra.mxu0 0.0
    %417 = vmatprep.subr.mxu0 0.0
    %418 = vmatpush2.msra.mxu0 0.0
    %419 = vmatprep.subr.mxu0 0.0
    %420 = vmatpush2.msra.mxu0 0.0
    %421 = vmatprep.subr.mxu0 0.0
    %422 = vmatpush2.msra.mxu0 0.0
    %423 = vmatprep.subr.mxu0 0.0
    %424 = vmatpush2.msra.mxu0 0.0
    %425 = vmatprep.subr.mxu0 0.0
    %426 = vmatpush2.msra.mxu0 0.0
    %427 = vmatprep.subr.mxu0 0.0
    %428 = vmatpush2.msra.mxu0 0.0
    %429 = vmatprep.subr.mxu0 0.0
    %430 = vmatpush2.msra.mxu0 0.0
    %431 = vmatprep.subr.mxu0 0.0
    %432 = vmatpush2.msra.mxu0 0.0
    %433 = vmatprep.subr.mxu0 0.0
    %434 = vmatpush2.msra.mxu0 0.0
    %435 = vmatprep.subr.mxu0 0.0
    %436 = vmatpush2.msra.mxu0 0.0
    %437 = vmatprep.subr.mxu0 0.0
    %438 = vmatpush2.msra.mxu0 0.0
    %439 = vmatprep.subr.mxu0 0.0
    %440 = vmatpush2.msra.mxu0 0.0
    %441 = vmatprep.subr.mxu0 0.0
    %442 = vmatpush2.msra.mxu0 0.0
    %443 = vmatprep.mubr.f32.mxu0 0.0
    %444 = vmatmul.mubr.f32.gmra.mxu0 %v332
    %v445 = vpop.f32.mrf.mxu0
    %v446 = vadd.f32 %v329, %v445
    %v447 = vpop.f32.mrf.mxu0
    %448 = vmatprep.mubr.f32.mxu0 0.0
    %449 = vmatmul.mubr.f32.gmra.mxu0 %v335
    %v450 = vpop.f32.mrf.mxu0
    %v451 = vadd.f32 %v329, %v450
    %v452 = vpop.f32.mrf.mxu0
    %453 = vmatprep.mubr.f32.mxu0 0.0
    %454 = vmatmul.mubr.f32.gmra.mxu0 %v338
    %v455 = vpop.f32.mrf.mxu0
    %v456 = vadd.f32 %v329, %v455
    %v457 = vpop.f32.mrf.mxu0
    %458 = vmatprep.mubr.f32.mxu0 0.0
    %459 = vmatmul.mubr.f32.gmra.mxu0 %v341
    %v460 = vpop.f32.mrf.mxu0
    %v461 = vadd.f32 %v329, %v460
    %v462 = vpop.f32.mrf.mxu0
    %463 = vmatprep.mubr.f32.mxu0 0.0
    %464 = vmatmul.mubr.f32.gmra.mxu0 %v344
    %v465 = vpop.f32.mrf.mxu0
    %v466 = vadd.f32 %v329, %v465
    %v467 = vpop.f32.mrf.mxu0
    %468 = vmatprep.mubr.f32.mxu0 0.0
    %469 = vmatmul.mubr.f32.gmra.mxu0 %v347
    %v470 = vpop.f32.mrf.mxu0
    %v471 = vadd.f32 %v329, %v470
    %v472 = vpop.f32.mrf.mxu0
    %473 = vmatprep.mubr.f32.mxu0 0.0
    %474 = vmatmul.mubr.f32.gmra.mxu0 %v350
    %v475 = vpop.f32.mrf.mxu0
    %v476 = vadd.f32 %v329, %v475
    %v477 = vpop.f32.mrf.mxu0
    %478 = vmatprep.mubr.f32.mxu0 0.0
    %479 = vmatmul.mubr.f32.gmra.mxu0 %v353
    %v480 = vpop.f32.mrf.mxu0
    %v481 = vadd.f32 %v329, %v480
    %v482 = vpop.f32.mrf.mxu0
    %483 = vmatprep.mubr.f32.mxu0 0.0
    %484 = vmatmul.mubr.f32.gmra.mxu0 %v356
    %v485 = vpop.f32.mrf.mxu0
    %v486 = vadd.f32 %v329, %v485
    %v487 = vpop.f32.mrf.mxu0
    %488 = vmatprep.mubr.f32.mxu0 0.0
    %489 = vmatmul.mubr.f32.gmra.mxu0 %v359
    %v490 = vpop.f32.mrf.mxu0
    %v491 = vadd.f32 %v329, %v490
    %v492 = vpop.f32.mrf.mxu0
    %493 = vmatprep.mubr.f32.mxu0 0.0
    %494 = vmatmul.mubr.f32.gmra.mxu0 %v362
    %v495 = vpop.f32.mrf.mxu0
    %v496 = vadd.f32 %v329, %v495
    %v497 = vpop.f32.mrf.mxu0
    %498 = vmatprep.mubr.f32.mxu0 0.0
    %499 = vmatmul.mubr.f32.gmra.mxu0 %v365
    %v500 = vpop.f32.mrf.mxu0
    %v501 = vadd.f32 %v329, %v500
    %v502 = vpop.f32.mrf.mxu0
    %503 = vmatprep.mubr.f32.mxu0 0.0
    %504 = vmatmul.mubr.f32.gmra.mxu0 %v368
    %v505 = vpop.f32.mrf.mxu0
    %v506 = vadd.f32 %v329, %v505
    %v507 = vpop.f32.mrf.mxu0
    %508 = vmatprep.mubr.f32.mxu0 0.0
    %509 = vmatmul.mubr.f32.gmra.mxu0 %v371
    %v510 = vpop.f32.mrf.mxu0
    %v511 = vadd.f32 %v329, %v510
    %v512 = vpop.f32.mrf.mxu0
    %513 = vmatprep.mubr.f32.mxu0 0.0
    %514 = vmatmul.mubr.f32.gmra.mxu0 %v374
    %v515 = vpop.f32.mrf.mxu0
    %v516 = vadd.f32 %v329, %v515
    %v517 = vpop.f32.mrf.mxu0
    %518 = vmatprep.mubr.f32.mxu0 0.0
    %519 = vmatmul.mubr.f32.gmra.mxu0 %v377
    %v520 = vpop.f32.mrf.mxu0
    %v521 = vadd.f32 %v329, %v520
    %v522 = vpop.f32.mrf.mxu0
    %523 = vdwg.mxu0
    %v524 = vmax.f32 %v446, 0.0
    %v525 = vmax.f32 %v451, 0.0
    %v526 = vmax.f32 %v456, 0.0
    %v527 = vmax.f32 %v461, 0.0
    %v528 = vmax.f32 %v466, 0.0
    %v529 = vmax.f32 %v471, 0.0
    %v530 = vmax.f32 %v476, 0.0
    %v531 = vmax.f32 %v481, 0.0
    %v532 = vmax.f32 %v486, 0.0
    %v533 = vmax.f32 %v491, 0.0
    %v534 = vmax.f32 %v496, 0.0
    %v535 = vmax.f32 %v501, 0.0
    %v536 = vmax.f32 %v506, 0.0
    %v537 = vmax.f32 %v511, 0.0
    %v538 = vmax.f32 %v516, 0.0
    %v539 = vmax.f32 %v521, 0.0
    %v540 = vsel %vm74, 1, 0
    %v541 = vsel %vm75, 1, 0
    %v542 = vsel %vm76, 1, 0
    %v543 = vsel %vm77, 1, 0
    %v544 = vsel %vm78, 1, 0
    %v545 = vsel %vm79, 1, 0
    %v546 = vsel %vm80, 1, 0
    %v547 = vsel %vm81, 1, 0
    %v548 = vsel %vm82, 1, 0
    %v549 = vsel %vm83, 1, 0
    %v550 = vsel %vm84, 1, 0
    %v551 = vsel %vm85, 1, 0
    %v552 = vsel %vm86, 1, 0
    %v553 = vsel %vm87, 1, 0
    %v554 = vsel %vm88, 1, 0
    %v555 = vsel %vm89, 1, 0
    %556 = vset.pattern.permute.xlu0 0
    %557 = vperm.xlu0 %556, %v540
    %v558 = vpop.permute.xlu0 %557
    %559 = vset.pattern.permute.xlu0 0
    %560 = vperm.xlu0 %559, %v541
    %v561 = vpop.permute.xlu0 %560
    %562 = vset.pattern.permute.xlu0 0
    %563 = vperm.xlu0 %562, %v542
    %v564 = vpop.permute.xlu0 %563
    %565 = vset.pattern.permute.xlu0 0
    %566 = vperm.xlu0 %565, %v543
    %v567 = vpop.permute.xlu0 %566
    %568 = vset.pattern.permute.xlu0 0
    %569 = vperm.xlu0 %568, %v544
    %v570 = vpop.permute.xlu0 %569
    %571 = vset.pattern.permute.xlu0 0
    %572 = vperm.xlu0 %571, %v545
    %v573 = vpop.permute.xlu0 %572
    %574 = vset.pattern.permute.xlu0 0
    %575 = vperm.xlu0 %574, %v546
    %v576 = vpop.permute.xlu0 %575
    %577 = vset.pattern.permute.xlu0 0
    %578 = vperm.xlu0 %577, %v547
    %v579 = vpop.permute.xlu0 %578
    %580 = vset.pattern.permute.xlu0 0
    %581 = vperm.xlu0 %580, %v548
    %v582 = vpop.permute.xlu0 %581
    %583 = vset.pattern.permute.xlu0 0
    %584 = vperm.xlu0 %583, %v549
    %v585 = vpop.permute.xlu0 %584
    %586 = vset.pattern.permute.xlu0 0
    %587 = vperm.xlu0 %586, %v550
    %v588 = vpop.permute.xlu0 %587
    %589 = vset.pattern.permute.xlu0 0
    %590 = vperm.xlu0 %589, %v551
    %v591 = vpop.permute.xlu0 %590
    %592 = vset.pattern.permute.xlu0 0
    %593 = vperm.xlu0 %592, %v552
    %v594 = vpop.permute.xlu0 %593
    %595 = vset.pattern.permute.xlu0 0
    %596 = vperm.xlu0 %595, %v553
    %v597 = vpop.permute.xlu0 %596
    %598 = vset.pattern.permute.xlu0 0
    %599 = vperm.xlu0 %598, %v554
    %v600 = vpop.permute.xlu0 %599
    %601 = vset.pattern.permute.xlu0 0
    %602 = vperm.xlu0 %601, %v555
    %v603 = vpop.permute.xlu0 %602
    %vm604 = vcmp.eq.s32.totalorder %v558, 1
    %vm605 = vcmp.eq.s32.totalorder %v561, 1
    %vm606 = vcmp.eq.s32.totalorder %v564, 1
    %vm607 = vcmp.eq.s32.totalorder %v567, 1
    %vm608 = vcmp.eq.s32.totalorder %v570, 1
    %vm609 = vcmp.eq.s32.totalorder %v573, 1
    %vm610 = vcmp.eq.s32.totalorder %v576, 1
    %vm611 = vcmp.eq.s32.totalorder %v579, 1
    %vm612 = vcmp.eq.s32.totalorder %v582, 1
    %vm613 = vcmp.eq.s32.totalorder %v585, 1
    %vm614 = vcmp.eq.s32.totalorder %v588, 1
    %vm615 = vcmp.eq.s32.totalorder %v591, 1
    %vm616 = vcmp.eq.s32.totalorder %v594, 1
    %vm617 = vcmp.eq.s32.totalorder %v597, 1
    %vm618 = vcmp.eq.s32.totalorder %v600, 1
    %vm619 = vcmp.eq.s32.totalorder %v603, 1
    %v620 = vsel %vm604, %v524, 0.0
    %v621 = vsel %vm605, %v525, 0.0
    %v622 = vsel %vm606, %v526, 0.0
    %v623 = vsel %vm607, %v527, 0.0
    %v624 = vsel %vm608, %v528, 0.0
    %v625 = vsel %vm609, %v529, 0.0
    %v626 = vsel %vm610, %v530, 0.0
    %v627 = vsel %vm611, %v531, 0.0
    %v628 = vsel %vm612, %v532, 0.0
    %v629 = vsel %vm613, %v533, 0.0
    %v630 = vsel %vm614, %v534, 0.0
    %v631 = vsel %vm615, %v535, 0.0
    %v632 = vsel %vm616, %v536, 0.0
    %v633 = vsel %vm617, %v537, 0.0
    %v634 = vsel %vm618, %v538, 0.0
    %v635 = vsel %vm619, %v539, 0.0
    %vm636 = vcmask 130048
    %v637 = vsel %vm636, %v620, 0.0
    %v638 = vrot.slane %v637, 4
    %v639 = vadd.f32 %v637, %v638
    %v640 = vrot.slane %v639, 2
    %v641 = vadd.f32 %v639, %v640
    %v642 = vrot.slane %v641, 1
    %v643 = vadd.f32 %v641, %v642
    %v644 = vsel %vm636, %v621, 0.0
    %v645 = vrot.slane %v644, 4
    %v646 = vadd.f32 %v644, %v645
    %v647 = vrot.slane %v646, 2
    %v648 = vadd.f32 %v646, %v647
    %v649 = vrot.slane %v648, 1
    %v650 = vadd.f32 %v648, %v649
    %v651 = vsel %vm636, %v622, 0.0
    %v652 = vrot.slane %v651, 4
    %v653 = vadd.f32 %v651, %v652
    %v654 = vrot.slane %v653, 2
    %v655 = vadd.f32 %v653, %v654
    %v656 = vrot.slane %v655, 1
    %v657 = vadd.f32 %v655, %v656
    %v658 = vsel %vm636, %v623, 0.0
    %v659 = vrot.slane %v658, 4
    %v660 = vadd.f32 %v658, %v659
    %v661 = vrot.slane %v660, 2
    %v662 = vadd.f32 %v660, %v661
    %v663 = vrot.slane %v662, 1
    %v664 = vadd.f32 %v662, %v663
    %v665 = vsel %vm636, %v624, 0.0
    %v666 = vrot.slane %v665, 4
    %v667 = vadd.f32 %v665, %v666
    %v668 = vrot.slane %v667, 2
    %v669 = vadd.f32 %v667, %v668
    %v670 = vrot.slane %v669, 1
    %v671 = vadd.f32 %v669, %v670
    %v672 = vsel %vm636, %v625, 0.0
    %v673 = vrot.slane %v672, 4
    %v674 = vadd.f32 %v672, %v673
    %v675 = vrot.slane %v674, 2
    %v676 = vadd.f32 %v674, %v675
    %v677 = vrot.slane %v676, 1
    %v678 = vadd.f32 %v676, %v677
    %v679 = vsel %vm636, %v626, 0.0
    %v680 = vrot.slane %v679, 4
    %v681 = vadd.f32 %v679, %v680
    %v682 = vrot.slane %v681, 2
    %v683 = vadd.f32 %v681, %v682
    %v684 = vrot.slane %v683, 1
    %v685 = vadd.f32 %v683, %v684
    %v686 = vsel %vm636, %v627, 0.0
    %v687 = vrot.slane %v686, 4
    %v688 = vadd.f32 %v686, %v687
    %v689 = vrot.slane %v688, 2
    %v690 = vadd.f32 %v688, %v689
    %v691 = vrot.slane %v690, 1
    %v692 = vadd.f32 %v690, %v691
    %v693 = vsel %vm636, %v628, 0.0
    %v694 = vrot.slane %v693, 4
    %v695 = vadd.f32 %v693, %v694
    %v696 = vrot.slane %v695, 2
    %v697 = vadd.f32 %v695, %v696
    %v698 = vrot.slane %v697, 1
    %v699 = vadd.f32 %v697, %v698
    %v700 = vsel %vm636, %v629, 0.0
    %v701 = vrot.slane %v700, 4
    %v702 = vadd.f32 %v700, %v701
    %v703 = vrot.slane %v702, 2
    %v704 = vadd.f32 %v702, %v703
    %v705 = vrot.slane %v704, 1
    %v706 = vadd.f32 %v704, %v705
    %v707 = vsel %vm636, %v630, 0.0
    %v708 = vrot.slane %v707, 4
    %v709 = vadd.f32 %v707, %v708
    %v710 = vrot.slane %v709, 2
    %v711 = vadd.f32 %v709, %v710
    %v712 = vrot.slane %v711, 1
    %v713 = vadd.f32 %v711, %v712
    %v714 = vsel %vm636, %v631, 0.0
    %v715 = vrot.slane %v714, 4
    %v716 = vadd.f32 %v714, %v715
    %v717 = vrot.slane %v716, 2
    %v718 = vadd.f32 %v716, %v717
    %v719 = vrot.slane %v718, 1
    %v720 = vadd.f32 %v718, %v719
    %v721 = vsel %vm636, %v632, 0.0
    %v722 = vrot.slane %v721, 4
    %v723 = vadd.f32 %v721, %v722
    %v724 = vrot.slane %v723, 2
    %v725 = vadd.f32 %v723, %v724
    %v726 = vrot.slane %v725, 1
    %v727 = vadd.f32 %v725, %v726
    %v728 = vsel %vm636, %v633, 0.0
    %v729 = vrot.slane %v728, 4
    %v730 = vadd.f32 %v728, %v729
    %v731 = vrot.slane %v730, 2
    %v732 = vadd.f32 %v730, %v731
    %v733 = vrot.slane %v732, 1
    %v734 = vadd.f32 %v732, %v733
    %v735 = vsel %vm636, %v634, 0.0
    %v736 = vrot.slane %v735, 4
    %v737 = vadd.f32 %v735, %v736
    %v738 = vrot.slane %v737, 2
    %v739 = vadd.f32 %v737, %v738
    %v740 = vrot.slane %v739, 1
    %v741 = vadd.f32 %v739, %v740
    %v742 = vsel %vm636, %v635, 0.0
    %v743 = vrot.slane %v742, 4
    %v744 = vadd.f32 %v742, %v743
    %v745 = vrot.slane %v744, 2
    %v746 = vadd.f32 %v744, %v745
    %v747 = vrot.slane %v746, 1
    %v748 = vadd.f32 %v746, %v747
    %v749 = vld [vmem:[%s1] sm:$0xff]
    %v750 = vld [vmem:[%s1 + $0x8] sm:$0xff]
    %vm767 = vcmask 1041409
    %v768 = vsel %vm767, %v650, %v643
    %vm769 = vcmask 1042434
    %v770 = vsel %vm769, %v657, %v768
    %vm771 = vcmask 1043459
    %v772 = vsel %vm771, %v664, %v770
    %vm773 = vcmask 1044484
    %v774 = vsel %vm773, %v671, %v772
    %vm775 = vcmask 1045509
    %v776 = vsel %vm775, %v678, %v774
    %vm777 = vcmask 1046534
    %v778 = vsel %vm777, %v685, %v776
    %vm779 = vcmask 1047559
    %v780 = vsel %vm779, %v692, %v778
    %v781 = vsel %vm767, %v706, %v699
    %v782 = vsel %vm769, %v713, %v781
    %v783 = vsel %vm771, %v720, %v782
    %v784 = vsel %vm773, %v727, %v783
    %v785 = vsel %vm775, %v734, %v784
    %v786 = vsel %vm777, %v741, %v785
    %v787 = vsel %vm779, %v748, %v786
    %788 = vrot.lane.b32.xlu0 %v780, 4
    %v789 = vpop.permute.xlu0 %788
    %790 = vrot.lane.b32.xlu0 %v787, 4
    %v791 = vpop.permute.xlu0 %790
    %vm794 = vcmask 31744
    %v795 = vsel %vm794, %v749, %v789
    %v796 = vsel %vm794, %v750, %v791
    %v797 = vlaneseq
    %v798 = vshrl.u32 %v797, 7
    %v799 = vsub.s32 0, %v798
    %v800 = vrot.slane %v25, %v799
    %vm801 = vcmask 162816
    %v803 = vsel %vm801, %v795, 0
    %v806 = vsel %vm801, %v796, 0
    %vm808 = vcmask 1043456
    %v810 = vsel %vm808, %v24, 0
    %812 = vmatprep.subr.mxu0 0.0
    %813 = vmatpush1.msra.mxu0 0.0
    %814 = vmatprep.subr.mxu0 0.0
    %815 = vmatpush1.msra.mxu0 0.0
    %816 = vmatprep.subr.mxu0 0.0
    %817 = vmatpush1.msra.mxu0 0.0
    %818 = vmatprep.subr.mxu0 0.0
    %819 = vmatpush1.msra.mxu0 0.0
    %820 = vmatprep.subr.mxu0 0.0
    %821 = vmatpush1.msra.mxu0 0.0
    %822 = vmatprep.subr.mxu0 0.0
    %823 = vmatpush1.msra.mxu0 0.0
    %824 = vmatprep.subr.mxu0 0.0
    %825 = vmatpush1.msra.mxu0 0.0
    %826 = vmatprep.subr.mxu0 0.0
    %827 = vmatpush1.msra.mxu0 0.0
    %828 = vmatprep.subr.mxu0 0.0
    %829 = vmatpush1.msra.mxu0 0.0
    %830 = vmatprep.subr.mxu0 0.0
    %831 = vmatpush1.msra.mxu0 0.0
    %832 = vmatprep.subr.mxu0 0.0
    %833 = vmatpush1.msra.mxu0 0.0
    %834 = vmatprep.subr.mxu0 0.0
    %835 = vmatpush1.msra.mxu0 0.0
    %836 = vmatprep.subr.mxu0 0.0
    %837 = vmatpush1.msra.mxu0 0.0
    %838 = vmatprep.subr.mxu0 0.0
    %839 = vmatpush1.msra.mxu0 %v810
    %840 = vmatprep.subr.mxu0 0.0
    %841 = vmatpush1.msra.mxu0 %v23
    %842 = vmatprep.subr.mxu0 0.0
    %843 = vmatpush1.msra.mxu0 %v22
    %844 = vmatprep.subr.mxu0 0.0
    %845 = vmatpush2.msra.mxu0 0.0
    %846 = vmatprep.subr.mxu0 0.0
    %847 = vmatpush2.msra.mxu0 0.0
    %848 = vmatprep.subr.mxu0 0.0
    %849 = vmatpush2.msra.mxu0 0.0
    %850 = vmatprep.subr.mxu0 0.0
    %851 = vmatpush2.msra.mxu0 0.0
    %852 = vmatprep.subr.mxu0 0.0
    %853 = vmatpush2.msra.mxu0 0.0
    %854 = vmatprep.subr.mxu0 0.0
    %855 = vmatpush2.msra.mxu0 0.0
    %856 = vmatprep.subr.mxu0 0.0
    %857 = vmatpush2.msra.mxu0 0.0
    %858 = vmatprep.subr.mxu0 0.0
    %859 = vmatpush2.msra.mxu0 0.0
    %860 = vmatprep.subr.mxu0 0.0
    %861 = vmatpush2.msra.mxu0 0.0
    %862 = vmatprep.subr.mxu0 0.0
    %863 = vmatpush2.msra.mxu0 0.0
    %864 = vmatprep.subr.mxu0 0.0
    %865 = vmatpush2.msra.mxu0 0.0
    %866 = vmatprep.subr.mxu0 0.0
    %867 = vmatpush2.msra.mxu0 0.0
    %868 = vmatprep.subr.mxu0 0.0
    %869 = vmatpush2.msra.mxu0 0.0
    %870 = vmatprep.subr.mxu0 0.0
    %871 = vmatpush2.msra.mxu0 0.0
    %872 = vmatprep.subr.mxu0 0.0
    %873 = vmatpush2.msra.mxu0 0.0
    %874 = vmatprep.subr.mxu0 0.0
    %875 = vmatpush2.msra.mxu0 0.0
    %876 = vmatprep.mubr.f32.mxu0 0.0
    %877 = vmatmul.mubr.f32.gmra.mxu0 %v803
    %v878 = vpop.f32.mrf.mxu0
    %v879 = vadd.f32 %v800, %v878
    %v880 = vpop.f32.mrf.mxu0
    %881 = vmatprep.mubr.f32.mxu0 0.0
    %882 = vmatmul.mubr.f32.gmra.mxu0 %v806
    %v883 = vpop.f32.mrf.mxu0
    %v884 = vadd.f32 %v800, %v883
    %v885 = vpop.f32.mrf.mxu0
    %886 = vdwg.mxu0
    %v887 = vlaneseq
    %v888 = vand.u32 %v887, 127
    %vm889 = vcmp.ge.s32.totalorder %v888, 32
    %v890 = vmax.f32 %v879, 0.0
    %v891 = vmax.f32 %v884, 0.0
    %v892 = vsel %vm889, %v890, %v879
    %v893 = vsel %vm889, %v891, %v884
    %vm894 = vcmask 392192
    %895 = vst.msk [vmem:[#allocation2] sm:$0xff] %vm894, %v892
    %896 = vst.msk [vmem:[#allocation2 + $0x8] sm:$0xff] %vm894, %v893
    // Predicated region
    $region14: #{tpu_custom_call.1} parent=1 // pred_check
      _
    $region15: #{tpu_custom_call.1} parent=1 // pred_check_branch
      %898 = sbr.rel (0) target = $region17
    $region16: #{tpu_custom_call.1} parent=1 // pred_region
      %s900 = ssub.s32 256, 256
      %901 = vsyncadd [#allocation3], %s900
      %s902 = sshll.u32 [#allocation2], 4
      %s903 = int_to_ptr.vmem [resolvable:$true] %s902
      %908 = dma.vmem_to_hbm [thread:$0]  %s903, 256, %s3, [#allocation3], 128, 128, 8
    $region17: #{tpu_custom_call.1} parent=1 // pred_fallthru
      _
    // Predicated region
    $region18: #{tpu_custom_call.1} parent=1 // pred_check
      _
    $region19: #{tpu_custom_call.1} parent=1 // pred_check_branch
      %910 = sbr.rel (0) target = $region21
    $region20: #{tpu_custom_call.1} parent=1 // pred_region
      %911 = dma.done [#allocation3], 256
    $region21: #{tpu_custom_call.1} parent=1 // pred_fallthru
      _
    %912 = vsyncpa [#allocation3], 1

</llo_original>
